<compile_context>
chip_gen: v6e
topology: v6e:2x2x1
jax: 0.10.0
libtpu: 0.0.40
codegen_flags: <defaults>
</compile_context>

<pallas_src>
import jax
import jax.numpy as jnp
from jax.experimental import pallas as pl
from jax.experimental.pallas import tpu as pltpu


def _round_up(n, m):
    return ((n + m - 1) // m) * m


def _linear_sigmoid_kernel(w_ref, b_ref, xT_ref, o_ref):
    # w_ref: (K,)  SMEM   (Linear weight, flattened)
    # b_ref: (1,)  SMEM   (Linear bias)
    # xT_ref: (K, TB) VMEM (features on sublanes, batch on lanes)
    # o_ref:  (1, TB) VMEM (lane-dense output row)
    x = xT_ref[...]                              # (K, TB) f32
    K = x.shape[0]
    # Unrolled K-term multiply-accumulate on the VPU (MXU skipped on purpose:
    # <1% utilization for an (*,8)@(8,1) shape; this kernel is HBM-bound).
    y = w_ref[0] * x[0:1, :]
    for k in range(1, K):
        y = y + w_ref[k] * x[k:k + 1, :]
    y = y + b_ref[0]
    # Sigmoid's transcendental goes to the otherwise-idle EUP slot.
    o_ref[...] = jax.nn.sigmoid(y).astype(o_ref.dtype)


def linear_sigmoid(x, weight, bias, *, max_tb=2048):
    """x: (B, K) f32, weight: (1, K) f32, bias: (1,) f32 -> (B, 1) f32."""
    B, K = x.shape
    assert weight.shape == (1, K)
    assert bias.shape == (1,)

    # Lane-dense layout: batch on the 128 lanes, K on the sublanes.
    xT = x.astype(jnp.float32).T                 # (K, B)

    # Tile the batch (lane) axis; pad to a multiple of the tile.
    TB = min(max_tb, _round_up(max(B, 1), 128))
    Bp = _round_up(B, TB)
    if Bp != B:
        xT = jnp.pad(xT, ((0, 0), (0, Bp - B)))

    w_flat = weight.reshape(K).astype(jnp.float32)
    b_flat = bias.reshape(1).astype(jnp.float32)

    yT = pl.pallas_call(
        _linear_sigmoid_kernel,
        out_shape=jax.ShapeDtypeStruct((1, Bp), jnp.float32),
        grid_spec=pltpu.PrefetchScalarGridSpec(
            num_scalar_prefetch=0,
            grid=(Bp // TB,),
            in_specs=[
                # 9 scalars total: keep them in SMEM, not padded VMEM tiles.
                pl.BlockSpec(memory_space=pltpu.MemorySpace.SMEM),  # weights
                pl.BlockSpec(memory_space=pltpu.MemorySpace.SMEM),  # bias
                pl.BlockSpec((K, TB), lambda i: (0, i)),            # xT tile
            ],
            out_specs=pl.BlockSpec((1, TB), lambda i: (0, i)),
        ),
        compiler_params=pltpu.CompilerParams(
            dimension_semantics=("parallel",)),
    )(w_flat, b_flat, xT)

    # Drop the lane padding and return PyTorch-shaped (B, 1).
    return yT[:, :B].T


if __name__ == "__main__":
    key = jax.random.PRNGKey(0)
    k_x, k_w, k_b, k_x2 = jax.random.split(key, 4)

    K = 8  # in_features of nn.Linear(8, 1)

    # Deterministic "PyTorch-like" init: U(-1/sqrt(K), 1/sqrt(K))
    bound = 1.0 / jnp.sqrt(jnp.float32(K))
    weight = jax.random.uniform(k_w, (1, K), jnp.float32, -bound, bound)
    bias = jax.random.uniform(k_b, (1,), jnp.float32, -bound, bound)

    # Small shape implied by the module: batch=8, features=8.
    x = jax.random.normal(k_x, (8, K), jnp.float32)
    out = jax.block_until_ready(linear_sigmoid(x, weight, bias))
    ref = jax.nn.sigmoid(x @ weight.T + bias)
    assert out.shape == (8, 1)
    assert jnp.allclose(out, ref, atol=1e-5, rtol=1e-5)

    # Second small case exercising padding + a multi-tile "parallel" grid.
    x2 = jax.random.normal(k_x2, (300, K), jnp.float32)
    out2 = jax.block_until_ready(linear_sigmoid(x2, weight, bias, max_tb=128))
    ref2 = jax.nn.sigmoid(x2 @ weight.T + bias)
    assert out2.shape == (300, 1)
    assert jnp.allclose(out2, ref2, atol=1e-5, rtol=1e-5)

    print("KERNEL_OK")
</pallas_src>

<mosaic_0001>
module attributes {stable_mosaic.version = 11 : i64} {
  func.func @_linear_sigmoid_kernel(%arg0: i32, %arg1: memref<8xf32, #tpu.memory_space<smem>>, %arg2: memref<1xf32, #tpu.memory_space<smem>>, %arg3: memref<8x128xf32, #tpu.memory_space<vmem>>, %arg4: memref<1x128xf32, #tpu.memory_space<vmem>>) attributes {dimension_semantics = [#tpu.dimension_semantics<parallel>], iteration_bounds = array<i64: 1>, scalar_prefetch = 0 : i64, scratch_operands = 0 : i64, tpu.core_type = #tpu.core_type<tc>, window_params = [{transform_indices = @transform_0, window_bounds = array<i64: 8>}, {transform_indices = @transform_1, window_bounds = array<i64: 1>}, {transform_indices = @transform_2, window_bounds = array<i64: 8, 128>}, {transform_indices = @transform_3, window_bounds = array<i64: 1, 128>}]} {
    %c0 = arith.constant 0 : index
    %c0_0 = arith.constant 0 : index
    %0 = vector.load %arg3[%c0, %c0_0] : memref<8x128xf32, #tpu.memory_space<vmem>>, vector<8x128xf32>
    %c0_1 = arith.constant 0 : index
    %1 = memref.load %arg1[%c0_1] : memref<8xf32, #tpu.memory_space<smem>>
    %2 = vector.extract_strided_slice %0 {offsets = [0, 0], sizes = [1, 128], strides = [1, 1]} : vector<8x128xf32> to vector<1x128xf32>
    %3 = vector.broadcast %1 : f32 to vector<1x128xf32>
    %4 = arith.mulf %3, %2 : vector<1x128xf32>
    %c1 = arith.constant 1 : index
    %5 = memref.load %arg1[%c1] : memref<8xf32, #tpu.memory_space<smem>>
    %6 = vector.extract_strided_slice %0 {offsets = [1, 0], sizes = [1, 128], strides = [1, 1]} : vector<8x128xf32> to vector<1x128xf32>
    %7 = vector.broadcast %5 : f32 to vector<1x128xf32>
    %8 = arith.mulf %7, %6 : vector<1x128xf32>
    %9 = arith.addf %4, %8 : vector<1x128xf32>
    %c2 = arith.constant 2 : index
    %10 = memref.load %arg1[%c2] : memref<8xf32, #tpu.memory_space<smem>>
    %11 = vector.extract_strided_slice %0 {offsets = [2, 0], sizes = [1, 128], strides = [1, 1]} : vector<8x128xf32> to vector<1x128xf32>
    %12 = vector.broadcast %10 : f32 to vector<1x128xf32>
    %13 = arith.mulf %12, %11 : vector<1x128xf32>
    %14 = arith.addf %9, %13 : vector<1x128xf32>
    %c3 = arith.constant 3 : index
    %15 = memref.load %arg1[%c3] : memref<8xf32, #tpu.memory_space<smem>>
    %16 = vector.extract_strided_slice %0 {offsets = [3, 0], sizes = [1, 128], strides = [1, 1]} : vector<8x128xf32> to vector<1x128xf32>
    %17 = vector.broadcast %15 : f32 to vector<1x128xf32>
    %18 = arith.mulf %17, %16 : vector<1x128xf32>
    %19 = arith.addf %14, %18 : vector<1x128xf32>
    %c4 = arith.constant 4 : index
    %20 = memref.load %arg1[%c4] : memref<8xf32, #tpu.memory_space<smem>>
    %21 = vector.extract_strided_slice %0 {offsets = [4, 0], sizes = [1, 128], strides = [1, 1]} : vector<8x128xf32> to vector<1x128xf32>
    %22 = vector.broadcast %20 : f32 to vector<1x128xf32>
    %23 = arith.mulf %22, %21 : vector<1x128xf32>
    %24 = arith.addf %19, %23 : vector<1x128xf32>
    %c5 = arith.constant 5 : index
    %25 = memref.load %arg1[%c5] : memref<8xf32, #tpu.memory_space<smem>>
    %26 = vector.extract_strided_slice %0 {offsets = [5, 0], sizes = [1, 128], strides = [1, 1]} : vector<8x128xf32> to vector<1x128xf32>
    %27 = vector.broadcast %25 : f32 to vector<1x128xf32>
    %28 = arith.mulf %27, %26 : vector<1x128xf32>
    %29 = arith.addf %24, %28 : vector<1x128xf32>
    %c6 = arith.constant 6 : index
    %30 = memref.load %arg1[%c6] : memref<8xf32, #tpu.memory_space<smem>>
    %31 = vector.extract_strided_slice %0 {offsets = [6, 0], sizes = [1, 128], strides = [1, 1]} : vector<8x128xf32> to vector<1x128xf32>
    %32 = vector.broadcast %30 : f32 to vector<1x128xf32>
    %33 = arith.mulf %32, %31 : vector<1x128xf32>
    %34 = arith.addf %29, %33 : vector<1x128xf32>
    %c7 = arith.constant 7 : index
    %35 = memref.load %arg1[%c7] : memref<8xf32, #tpu.memory_space<smem>>
    %36 = vector.extract_strided_slice %0 {offsets = [7, 0], sizes = [1, 128], strides = [1, 1]} : vector<8x128xf32> to vector<1x128xf32>
    %37 = vector.broadcast %35 : f32 to vector<1x128xf32>
    %38 = arith.mulf %37, %36 : vector<1x128xf32>
    %39 = arith.addf %34, %38 : vector<1x128xf32>
    %c0_2 = arith.constant 0 : index
    %40 = memref.load %arg2[%c0_2] : memref<1xf32, #tpu.memory_space<smem>>
    %41 = vector.broadcast %40 : f32 to vector<1x128xf32>
    %42 = arith.addf %39, %41 : vector<1x128xf32>
    %43 = arith.negf %42 : vector<1x128xf32>
    %44 = math.exp %43 : vector<1x128xf32>
    %cst = arith.constant 1.000000e+00 : f32
    %45 = vector.broadcast %cst : f32 to vector<1x128xf32>
    %46 = arith.addf %45, %44 : vector<1x128xf32>
    %47 = arith.divf %45, %46 : vector<1x128xf32>
    %c0_3 = arith.constant 0 : index
    %c0_4 = arith.constant 0 : index
    %48 = vector.load %arg4[%c0_3, %c0_4] : memref<1x128xf32, #tpu.memory_space<vmem>>, vector<1x128xf32>
    tpu.vector_store %arg4[%c0_3, %c0_4], %47 {strides = array<i32>} : memref<1x128xf32, #tpu.memory_space<vmem>>, vector<1x128xf32>,
    return
  }
  func.func @transform_0(%arg0: i32) -> i32 {
    %c0_i32 = arith.constant 0 : i32
    %c0_i32_0 = arith.constant 0 : i32
    return %c0_i32 : i32
  }
  func.func @transform_1(%arg0: i32) -> i32 {
    %c0_i32 = arith.constant 0 : i32
    %c0_i32_0 = arith.constant 0 : i32
    return %c0_i32 : i32
  }
  func.func @transform_2(%arg0: i32) -> (i32, i32) {
    %c0_i32 = arith.constant 0 : i32
    %c0_i32_0 = arith.constant 0 : i32
    return %c0_i32, %arg0 : i32, i32
  }
  func.func @transform_3(%arg0: i32) -> (i32, i32) {
    %c0_i32 = arith.constant 0 : i32
    %c0_i32_0 = arith.constant 0 : i32
    return %c0_i32, %arg0 : i32, i32
  }
}

</mosaic_0001>

<llo_original>
// kernel: tpu_custom_call.1
$region0: #{tpu_custom_call.1}
  #allocation0 [shape = 'u32[]', space=smem, size = 0x4, offset = 0x4, fixed_abs, tag = 'smem constant byte address 0x4 - core index']
  #allocation1 [shape = 'u32[144,128]{1,0:T(1,128)}', space=vmem, size = 0x12000, scoped, tag = 'internal scratch']
  #allocation2 [shape = 'f32[1]{0:T(128)S(6)}', space=smem, size = 0x200, scoped, tag = 'scoped memory for tpu_custom_call.1']
  %s0 = inlined_call_operand.vmem [shape: f32[8], index: 0, kind: input, shape index: {}]
  %s1 = inlined_call_operand.<no memory space> [shape: f32[1], index: 1, kind: input, shape index: {}]
  %s2 = inlined_call_operand.hbm [shape: f32[8,128], index: 2, kind: input, shape index: {}]
  %s3 = inlined_call_operand.hbm [shape: f32[1,128], index: 3, kind: output, shape index: {}]
  %s4 = sld [smem:[#allocation0]]
  $region30: #{tpu_custom_call.1} parent=0
    _
  %s6 = ssub.s32 1, %s4
  %s7 = scalar_select 0, %s6, %s4
  %8 = sst [smem:[#allocation2]] %s1
  $region1: #{tpu_custom_call.1} parent=0
    #allocation3 [shape = 'u8[512]{0}', space=smem, size = 0x200, scoped, tag = 'input window, operand 0, single buffered']
    #allocation4 [shape = 's32[1]{0}', space=sflag, size = 0x4, scoped, tag = 'scoped memory for tpu_custom_call.1']
    #allocation5 [shape = 's32[1]{0}', space=sflag, size = 0x4, scoped, tag = 'scoped memory for tpu_custom_call.1']
    #allocation6 [shape = 's32[1]{0}', space=sflag, size = 0x4, scoped, tag = 'scoped memory for tpu_custom_call.1']
    #allocation7 [shape = 'u8[4096]{0}', space=vmem, size = 0x1000, scoped, tag = 'input window, operand 2, single buffered']
    #allocation8 [shape = 'u8[512]{0}', space=vmem, size = 0x400, scoped, tag = 'output window, operand 0, single buffered']
    %9 = vsyncpa [#allocation6], 0
    %10 = vsyncpa [#allocation4], 0
    %11 = vsyncpa [#allocation5], 0
    // Predicated region
    $region2: #{tpu_custom_call.1} parent=1 // pred_check
      _
    $region3: #{tpu_custom_call.1} parent=1 // pred_check_branch
      %13 = sbr.rel (0) target = $region5
    $region4: #{tpu_custom_call.1} parent=1 // pred_region
      %s15 = ssub.s32 16, 16
      %16 = vsyncadd [#allocation6], %s15
      %s18 = sshll.u32 %s0, 4
      %s19 = int_to_ptr.vmem [resolvable:$true] %s18
      %21 = dma.vmem_to_smem %s19, 16, [#allocation3], [#allocation6]
    $region5: #{tpu_custom_call.1} parent=1 // pred_fallthru
      _
    // Predicated region
    $region6: #{tpu_custom_call.1} parent=1 // pred_check
      _
    $region7: #{tpu_custom_call.1} parent=1 // pred_check_branch
      %23 = sbr.rel (0) target = $region9
    $region8: #{tpu_custom_call.1} parent=1 // pred_region
      _
    $region9: #{tpu_custom_call.1} parent=1 // pred_fallthru
      _
    // Predicated region
    $region10: #{tpu_custom_call.1} parent=1 // pred_check
      _
    $region11: #{tpu_custom_call.1} parent=1 // pred_check_branch
      %25 = sbr.rel (0) target = $region13
    $region12: #{tpu_custom_call.1} parent=1 // pred_region
      %s27 = ssub.s32 128, 128
      %28 = vsyncadd [#allocation4], %s27
      %s30 = sshll.u32 [#allocation7], 4
      %s31 = int_to_ptr.vmem [resolvable:$true] %s30
      %33 = dma.hbm_to_vmem [thread:$0]  %s2, 128, %s31, [#allocation4]
    $region13: #{tpu_custom_call.1} parent=1 // pred_fallthru
      _
    // Predicated region
    $region14: #{tpu_custom_call.1} parent=1 // pred_check
      _
    $region15: #{tpu_custom_call.1} parent=1 // pred_check_branch
      %35 = sbr.rel (0) target = $region17
    $region16: #{tpu_custom_call.1} parent=1 // pred_region
      %36 = dma.done [#allocation6], 16
    $region17: #{tpu_custom_call.1} parent=1 // pred_fallthru
      _
    // Predicated region
    $region18: #{tpu_custom_call.1} parent=1 // pred_check
      _
    $region19: #{tpu_custom_call.1} parent=1 // pred_check_branch
      %38 = sbr.rel (0) target = $region21
    $region20: #{tpu_custom_call.1} parent=1 // pred_region
      %39 = dma.done [#allocation4], 128
    $region21: #{tpu_custom_call.1} parent=1 // pred_fallthru
      _
    %40 = sfence
    %v41 = vld [vmem:[#allocation7] sm:$0xff]
    %s42 = sld [smem:[#allocation3]]
    %v43 = vstv %s42
    %v44 = vmul.f32 %v43, %v41
    %s45 = sld [smem:[#allocation3 + $0x1]]
    %v46 = vstv %s45
    %v47 = vmul.f32 %v46, %v41
    %v49 = vrot.slane %v47, 1
    %v51 = vadd.f32 %v44, %v49
    %s52 = sld [smem:[#allocation3 + $0x2]]
    %v53 = vstv %s52
    %v54 = vmul.f32 %v53, %v41
    %v56 = vrot.slane %v54, 2
    %v58 = vadd.f32 %v51, %v56
    %s59 = sld [smem:[#allocation3 + $0x3]]
    %v60 = vstv %s59
    %v61 = vmul.f32 %v60, %v41
    %v63 = vrot.slane %v61, 3
    %v65 = vadd.f32 %v58, %v63
    %s66 = sld [smem:[#allocation3 + $0x4]]
    %v67 = vstv %s66
    %v68 = vmul.f32 %v67, %v41
    %v70 = vrot.slane %v68, 4
    %v72 = vadd.f32 %v65, %v70
    %s73 = sld [smem:[#allocation3 + $0x5]]
    %v74 = vstv %s73
    %v75 = vmul.f32 %v74, %v41
    %v77 = vrot.slane %v75, 5
    %v79 = vadd.f32 %v72, %v77
    %s80 = sld [smem:[#allocation3 + $0x6]]
    %v81 = vstv %s80
    %v82 = vmul.f32 %v81, %v41
    %v84 = vrot.slane %v82, 6
    %v86 = vadd.f32 %v79, %v84
    %s87 = sld [smem:[#allocation3 + $0x7]]
    %v88 = vstv %s87
    %v89 = vmul.f32 %v88, %v41
    %v91 = vrot.slane %v89, 7
    %v93 = vadd.f32 %v86, %v91
    %s94 = sld [smem:[#allocation2]]
    %v95 = vstv %s94
    %v96 = vadd.f32 %v93, %v95
    %v97 = vxor.u32 %v96, 2147483648
    %v98 = vmul.f32 %v97, 1.442695
    %v99 = vpow.pop %v98
    %v100 = vadd.f32 %v99, 1.0
    %v101 = vrcp.pop %v100
    %v102 = vmul.f32 1.0, %v101
    %103 = vst [vmem:[#allocation8] sm:$0x1] %v102
    // Predicated region
    $region22: #{tpu_custom_call.1} parent=1 // pred_check
      _
    $region23: #{tpu_custom_call.1} parent=1 // pred_check_branch
      %105 = sbr.rel (0) target = $region25
    $region24: #{tpu_custom_call.1} parent=1 // pred_region
      %s107 = ssub.s32 16, 16
      %108 = vsyncadd [#allocation5], %s107
      %s110 = sshll.u32 [#allocation8], 4
      %s111 = int_to_ptr.vmem [resolvable:$true] %s110
      %113 = dma.vmem_to_hbm [thread:$0]  %s111, 16, %s3, [#allocation5]
    $region25: #{tpu_custom_call.1} parent=1 // pred_fallthru
      _
    // Predicated region
    $region26: #{tpu_custom_call.1} parent=1 // pred_check
      _
    $region27: #{tpu_custom_call.1} parent=1 // pred_check_branch
      %115 = sbr.rel (0) target = $region29
    $region28: #{tpu_custom_call.1} parent=1 // pred_region
      %116 = dma.done [#allocation5], 16
    $region29: #{tpu_custom_call.1} parent=1 // pred_fallthru
      _
    %117 = vsyncpa [#allocation4], 1
    %118 = vsyncpa [#allocation5], 1
    %119 = vsyncpa [#allocation6], 1

</llo_original>
